<compile_context>
chip_gen: v7x
topology: tpu7x:2x2x1
jax: 0.10.0
libtpu: 0.0.40
codegen_flags: <defaults>
</compile_context>

<pallas_src>
import jax
import jax.numpy as jnp
from jax.experimental import pallas as pl
from jax.experimental.pallas import tpu as pltpu


# ---------------------------------------------------------------------------
# Kernel
# ---------------------------------------------------------------------------

def _make_weighted_sum_kernel(num_layers: int, normalize: bool, eps: float = 1e-5):
    def kernel(w_ref, *refs):
        # w_ref : SMEM (L,) f32  -- softmax-normalized layer weights (scalar prefetch)
        # refs  : L VMEM input tiles (tile_rows, cols) + 1 VMEM output tile
        x_refs = refs[:num_layers]
        o_ref = refs[num_layers]
        acc = None
        for l in range(num_layers):            # static unroll; L is small
            xl = x_refs[l][...].astype(jnp.float32)
            if normalize:
                # F.layer_norm over the last dim, no affine params (two-pass var).
                mean = jnp.mean(xl, axis=-1, keepdims=True)
                centered = xl - mean
                var = jnp.mean(centered * centered, axis=-1, keepdims=True)
                xl = centered * jax.lax.rsqrt(var + eps)
            term = w_ref[l] * xl
            acc = term if acc is None else acc + term
        o_ref[...] = acc.astype(o_ref.dtype)

    return kernel


# ---------------------------------------------------------------------------
# Wrapper
# ---------------------------------------------------------------------------

_MIN_GRID = 8                    # >=2 TCs on v7x get work; pipelining everywhere
_MAX_TILE_ROWS = 2048
_LANE_CANDIDATES = (1024, 512, 256, 128)   # lane-dense widths for the elementwise path


def _round_up(x: int, m: int) -> int:
    return ((x + m - 1) // m) * m


def _vmem_limits():
    """(scoped vmem_limit_bytes, I/O+temporary tile budget), per generation."""
    try:
        cap = int(pltpu.get_tpu_info().vmem_capacity_bytes)
    except Exception:
        cap = 64 * 1024 * 1024           # conservative (v7x-sized) fallback
    limit = min(cap // 2, 64 * 1024 * 1024)
    limit = max(limit, 16 * 1024 * 1024)
    budget = (limit * 3) // 5            # keep tiles <= ~60% of the scoped limit
    return limit, budget


def _choose_tile_rows(num_layers: int, cols: int, in_itemsize: int,
                      out_itemsize: int, rows_needed: int, sub: int,
                      budget: int) -> int:
    if rows_needed <= sub:
        return rows_needed               # single full-extent block
    # Honest per-row VMEM accounting: double-buffered inputs + output, plus
    # ~3 f32 "columns worth" of in-kernel temporaries (upcast, acc, LN temps).
    per_row = (2 * num_layers * cols * in_itemsize
               + 2 * cols * out_itemsize
               + 3 * cols * 4)
    tile = max(sub, (budget // per_row) // sub * sub)
    # Keep at least ~_MIN_GRID grid steps so megacore + pipelining stay active.
    tile = min(tile, _round_up(pl.cdiv(rows_needed, _MIN_GRID), sub))
    tile = min(tile, _MAX_TILE_ROWS)
    tile = min(tile, _round_up(rows_needed, sub))
    return max(tile, sub)


def weighted_sum_pallas(features, weights, normalize=False, output_dtype=None):
    """features: list of L arrays of shape (B, T, D); weights: (L,).

    Returns the softmax-weighted (optionally layer-normed) sum, shape (B, T, D).
    """
    num_layers = len(features)
    B, T, D = features[0].shape
    in_dtype = features[0].dtype
    if output_dtype is None:
        # Match torch type-promotion: f32 weights * feats -> f32 output.
        out_dtype = jnp.promote_types(in_dtype, jnp.float32)
    else:
        out_dtype = jnp.dtype(output_dtype)   # e.g. bf16 store to cut HBM traffic
    in_itemsize = jnp.dtype(in_dtype).itemsize
    out_itemsize = jnp.dtype(out_dtype).itemsize
    sub = max(8, 32 // max(1, in_itemsize))   # sublane multiple (8 f32, 16 bf16)

    # Tiny parameter glue stays in JAX.
    norm_w = jax.nn.softmax(weights.astype(jnp.float32), axis=-1)

    vmem_limit, budget = _vmem_limits()

    # Pick a 2D layout.  Every reshape below is a free metadata reshape of a
    # contiguous array -- there is NO padding and NO epilogue slicing.
    if normalize:
        # Layer-norm needs the true feature dim as the last axis.
        rows_needed, cols = B * T, D
    else:
        total = B * T * D
        cols = 0
        for cand in _LANE_CANDIDATES:
            if total % cand == 0:
                cols = cand              # lane-dense, unmasked full-width stores
                break
        if cols:
            rows_needed = total // cols
        else:
            rows_needed, cols = B * T, D  # odd D: masked lanes, but zero extra copies
    xs = [f.reshape(rows_needed, cols) for f in features]

    tile_rows = _choose_tile_rows(num_layers, cols, in_itemsize, out_itemsize,
                                  rows_needed, sub, budget)
    grid = pl.cdiv(rows_needed, tile_rows)   # Pallas masks the partial last block

    in_specs = [pl.BlockSpec((tile_rows, cols), lambda i, w: (i, 0))
                for _ in range(num_layers)]
    out_spec = pl.BlockSpec((tile_rows, cols), lambda i, w: (i, 0))

    flops = 2 * num_layers * rows_needed * cols
    if normalize:
        flops += 5 * num_layers * rows_needed * cols
    cost = pl.CostEstimate(
        flops=flops,
        transcendentals=(num_layers * rows_needed) if normalize else 0,
        bytes_accessed=(num_layers * rows_needed * cols * in_itemsize
                        + rows_needed * cols * out_itemsize
                        + num_layers * 4),
    )

    out = pl.pallas_call(
        _make_weighted_sum_kernel(num_layers, normalize),
        out_shape=jax.ShapeDtypeStruct((rows_needed, cols), out_dtype),
        grid_spec=pltpu.PrefetchScalarGridSpec(
            num_scalar_prefetch=1,        # softmax weights land in SMEM
            grid=(grid,),
            in_specs=in_specs,
            out_specs=out_spec,
        ),
        compiler_params=pltpu.CompilerParams(
            dimension_semantics=("parallel",),
            vmem_limit_bytes=vmem_limit),
        cost_estimate=cost,
    )(norm_w, *xs)

    return out.reshape(B, T, D)


# ---------------------------------------------------------------------------
# Featurizer (forward-pass semantics of the PyTorch module)
# ---------------------------------------------------------------------------

class Featurizer:
    """JAX/Pallas re-implementation of the PyTorch Featurizer forward pass.

    The upstream probing / hook machinery in the original __init__ only
    determines layer_num / output_dim / downsample_rate; here they are given
    directly.
    """

    def __init__(self, layer_num: int, feat_dim: int,
                 feature_selection: str = "hidden_states",
                 layer_selection: int = None, normalize: bool = False,
                 output_dtype=None):
        self.name = "Featurizer"
        self.feature_selection = feature_selection
        self.layer_selection = layer_selection
        self.normalize = normalize
        self.layer_num = layer_num
        self.output_dim = feat_dim
        self.output_dtype = output_dtype   # None keeps torch's f32 promotion
        # matches nn.Parameter(torch.zeros(layer_num)) -> uniform softmax
        self.weights = jnp.zeros((layer_num,), jnp.float32)
        # TODO(synk): downsample_rate derivation needs a real upstream model;
        # it does not affect forward() semantics.

    def _select_feature(self, features):
        feature = features.get(self.feature_selection)
        if isinstance(feature, dict):
            feature = list(feature.values())
        if isinstance(feature, (list, tuple)) and len(feature) == 1:
            feature = feature[0]
        if isinstance(feature, (list, tuple)) and isinstance(self.layer_selection, int):
            feature = feature[self.layer_selection]
        return feature

    def _weighted_sum(self, feature):
        assert self.layer_num == len(feature)
        # No jnp.stack: pass the layer list straight to the kernel wrapper.
        return weighted_sum_pallas(list(feature), self.weights,
                                   normalize=self.normalize,
                                   output_dtype=self.output_dtype)

    def tolist(self, paired_wavs, paired_feature):
        # NOTE: each per-batch slice is an XLA copy; downstreams that can take
        # the batched (B, T, D) array should call forward_batched() instead.
        assert paired_feature.ndim == 3, "(batch_size, max_seq_len, feat_dim)"
        return [paired_feature[b] for b in range(paired_feature.shape[0])]

    def forward_batched(self, paired_wavs, paired_features):
        feature = self._select_feature(paired_features)
        if isinstance(feature, (list, tuple)):
            feature = self._weighted_sum(feature)
        return feature

    def forward(self, paired_wavs, paired_features):
        feature = self.forward_batched(paired_wavs, paired_features)
        return self.tolist(paired_wavs, feature)


# ---------------------------------------------------------------------------
# Reference + test
# ---------------------------------------------------------------------------

def _reference_weighted_sum(stacked, weights, normalize=False, eps=1e-5):
    x = stacked.astype(jnp.float32)
    if normalize:
        mean = x.mean(-1, keepdims=True)
        var = ((x - mean) ** 2).mean(-1, keepdims=True)
        x = (x - mean) / jnp.sqrt(var + eps)
    w = jax.nn.softmax(weights.astype(jnp.float32))
    return (w[:, None, None, None] * x).sum(0)


if __name__ == "__main__":
    key = jax.random.PRNGKey(0)
    # (L, B, T, D): the first config hits the lane-dense elementwise layout,
    # the second (odd T/D) exercises the masked partial boundary block on both
    # the elementwise and the layer-norm paths.
    configs = [
        (4, 2, 8, 32),
        (3, 2, 9, 40),
    ]

    for (L, B, T, D) in configs:
        keys = jax.random.split(key, L + 1)
        hidden_states = [jax.random.normal(k, (B, T, D), dtype=jnp.float32)
                         for k in keys[:L]]
        test_weights = jax.random.normal(keys[L], (L,), dtype=jnp.float32)

        paired_wavs = None  # only used for list-length bookkeeping originally
        paired_features = {"hidden_states": hidden_states}

        for normalize in (False, True):
            featurizer = Featurizer(layer_num=L, feat_dim=D, normalize=normalize)
            featurizer.weights = test_weights  # non-trivial weights for the check

            out_list = featurizer.forward(paired_wavs, paired_features)
            out = jnp.stack(out_list, axis=0)
            out = jax.block_until_ready(out)

            ref = _reference_weighted_sum(jnp.stack(hidden_states, 0),
                                          featurizer.weights, normalize=normalize)
            assert out.shape == (B, T, D)
            assert jnp.allclose(out, ref, atol=1e-4, rtol=1e-4), \
                f"mismatch L={L} B={B} T={T} D={D} normalize={normalize}"

    print("KERNEL_OK")
</pallas_src>

<mosaic_0001>
module attributes {stable_mosaic.version = 11 : i64} {
  func.func @kernel(%arg0: i32, %arg1: memref<4xf32, #tpu.memory_space<smem>>, %arg2: memref<1x512xf32, #tpu.memory_space<vmem>>, %arg3: memref<1x512xf32, #tpu.memory_space<vmem>>, %arg4: memref<1x512xf32, #tpu.memory_space<vmem>>, %arg5: memref<1x512xf32, #tpu.memory_space<vmem>>, %arg6: memref<1x512xf32, #tpu.memory_space<vmem>>) attributes {dimension_semantics = [#tpu.dimension_semantics<parallel>], iteration_bounds = array<i64: 1>, scalar_prefetch = 1 : i64, scratch_operands = 0 : i64, tpu.core_type = #tpu.core_type<tc>, window_params = [{transform_indices = @transform_0, window_bounds = array<i64: 1, 512>}, {transform_indices = @transform_1, window_bounds = array<i64: 1, 512>}, {transform_indices = @transform_2, window_bounds = array<i64: 1, 512>}, {transform_indices = @transform_3, window_bounds = array<i64: 1, 512>}, {transform_indices = @transform_4, window_bounds = array<i64: 1, 512>}]} {
    %c0 = arith.constant 0 : index
    %c0_0 = arith.constant 0 : index
    %0 = vector.load %arg2[%c0, %c0_0] : memref<1x512xf32, #tpu.memory_space<vmem>>, vector<1x512xf32>
    %c0_1 = arith.constant 0 : index
    %1 = memref.load %arg1[%c0_1] : memref<4xf32, #tpu.memory_space<smem>>
    %2 = vector.broadcast %1 : f32 to vector<1x512xf32>
    %3 = arith.mulf %2, %0 : vector<1x512xf32>
    %c0_2 = arith.constant 0 : index
    %c0_3 = arith.constant 0 : index
    %4 = vector.load %arg3[%c0_2, %c0_3] : memref<1x512xf32, #tpu.memory_space<vmem>>, vector<1x512xf32>
    %c1 = arith.constant 1 : index
    %5 = memref.load %arg1[%c1] : memref<4xf32, #tpu.memory_space<smem>>
    %6 = vector.broadcast %5 : f32 to vector<1x512xf32>
    %7 = arith.mulf %6, %4 : vector<1x512xf32>
    %8 = arith.addf %3, %7 : vector<1x512xf32>
    %c0_4 = arith.constant 0 : index
    %c0_5 = arith.constant 0 : index
    %9 = vector.load %arg4[%c0_4, %c0_5] : memref<1x512xf32, #tpu.memory_space<vmem>>, vector<1x512xf32>
    %c2 = arith.constant 2 : index
    %10 = memref.load %arg1[%c2] : memref<4xf32, #tpu.memory_space<smem>>
    %11 = vector.broadcast %10 : f32 to vector<1x512xf32>
    %12 = arith.mulf %11, %9 : vector<1x512xf32>
    %13 = arith.addf %8, %12 : vector<1x512xf32>
    %c0_6 = arith.constant 0 : index
    %c0_7 = arith.constant 0 : index
    %14 = vector.load %arg5[%c0_6, %c0_7] : memref<1x512xf32, #tpu.memory_space<vmem>>, vector<1x512xf32>
    %c3 = arith.constant 3 : index
    %15 = memref.load %arg1[%c3] : memref<4xf32, #tpu.memory_space<smem>>
    %16 = vector.broadcast %15 : f32 to vector<1x512xf32>
    %17 = arith.mulf %16, %14 : vector<1x512xf32>
    %18 = arith.addf %13, %17 : vector<1x512xf32>
    %c0_8 = arith.constant 0 : index
    %c0_9 = arith.constant 0 : index
    %19 = vector.load %arg6[%c0_8, %c0_9] : memref<1x512xf32, #tpu.memory_space<vmem>>, vector<1x512xf32>
    tpu.vector_store %arg6[%c0_8, %c0_9], %18 {strides = array<i32>} : memref<1x512xf32, #tpu.memory_space<vmem>>, vector<1x512xf32>,
    return
  }
  func.func @transform_0(%arg0: i32, %arg1: memref<4xf32, #tpu.memory_space<smem>>) -> (i32, i32) {
    %c0_i32 = arith.constant 0 : i32
    %c0_i32_0 = arith.constant 0 : i32
    return %arg0, %c0_i32 : i32, i32
  }
  func.func @transform_1(%arg0: i32, %arg1: memref<4xf32, #tpu.memory_space<smem>>) -> (i32, i32) {
    %c0_i32 = arith.constant 0 : i32
    %c0_i32_0 = arith.constant 0 : i32
    return %arg0, %c0_i32 : i32, i32
  }
  func.func @transform_2(%arg0: i32, %arg1: memref<4xf32, #tpu.memory_space<smem>>) -> (i32, i32) {
    %c0_i32 = arith.constant 0 : i32
    %c0_i32_0 = arith.constant 0 : i32
    return %arg0, %c0_i32 : i32, i32
  }
  func.func @transform_3(%arg0: i32, %arg1: memref<4xf32, #tpu.memory_space<smem>>) -> (i32, i32) {
    %c0_i32 = arith.constant 0 : i32
    %c0_i32_0 = arith.constant 0 : i32
    return %arg0, %c0_i32 : i32, i32
  }
  func.func @transform_4(%arg0: i32, %arg1: memref<4xf32, #tpu.memory_space<smem>>) -> (i32, i32) {
    %c0_i32 = arith.constant 0 : i32
    %c0_i32_0 = arith.constant 0 : i32
    return %arg0, %c0_i32 : i32, i32
  }
}

</mosaic_0001>

<llo_original>
// kernel: tpu_custom_call.1
$region0: #{tpu_custom_call.1}
  #allocation0 [shape = 'u32[]', space=smem, size = 0x4, offset = 0x4, fixed_abs, tag = 'smem constant byte address 0x4 - core index']
  #allocation1 [shape = 'u32[144,128]{1,0:T(1,128)}', space=vmem, size = 0x12000, scoped, tag = 'internal scratch']
  #allocation2 [shape = 's32[1]{0}', space=sflag, size = 0x4, scoped, tag = 'scoped memory for tpu_custom_call.1']
  #allocation3 [shape = 'u8[512]{0}', space=smem, size = 0x200, scoped, tag = 'prefetched SMEM operand 0']
  %s0 = inlined_call_operand.hbm [shape: f32[4], index: 0, kind: input, shape index: {}]
  %s1 = inlined_call_operand.hbm [shape: f32[1,512], index: 1, kind: input, shape index: {}]
  %s2 = inlined_call_operand.vmem [shape: f32[1,512], index: 2, kind: input, shape index: {}]
  %s3 = inlined_call_operand.vmem [shape: f32[1,512], index: 3, kind: input, shape index: {}]
  %s4 = inlined_call_operand.vmem [shape: f32[1,512], index: 4, kind: input, shape index: {}]
  %s5 = inlined_call_operand.hbm [shape: f32[1,512], index: 5, kind: output, shape index: {}]
  %s6 = sld [smem:[#allocation0]]
  $region30: #{tpu_custom_call.1} parent=0
    _
  %s8 = ssub.s32 1, %s6
  %s9 = scalar_select 0, %s8, %s6
  %11 = dma.hbm_to_smem %s0, 16, [#allocation3], [#allocation2]
  %12 = dma.done [#allocation2], 16
  %13 = sfence
  $region1: #{tpu_custom_call.1} parent=0
    #allocation4 [shape = 'u8[2048]{0}', space=vmem, size = 0x800, scoped, tag = 'input window, operand 1, single buffered']
    #allocation5 [shape = 's32[1]{0}', space=sflag, size = 0x4, scoped, tag = 'scoped memory for tpu_custom_call.1']
    #allocation6 [shape = 's32[1]{0}', space=sflag, size = 0x4, scoped, tag = 'scoped memory for tpu_custom_call.1']
    #allocation7 [shape = 'u8[2048]{0}', space=vmem, size = 0x800, scoped, tag = 'output window, operand 0, single buffered']
    %14 = vsyncpa [#allocation5], 0
    %15 = vsyncpa [#allocation6], 0
    // Predicated region
    $region2: #{tpu_custom_call.1} parent=1 // pred_check
      _
    $region3: #{tpu_custom_call.1} parent=1 // pred_check_branch
      %17 = sbr.rel (0) target = $region5
    $region4: #{tpu_custom_call.1} parent=1 // pred_region
      %s19 = ssub.s32 64, 64
      %20 = vsyncadd [#allocation5], %s19
      %s22 = sshll.u32 [#allocation4], 4
      %s23 = int_to_ptr.vmem [resolvable:$true] %s22
      %25 = dma.hbm_to_vmem [thread:$0]  %s1, 64, %s23, [#allocation5]
    $region5: #{tpu_custom_call.1} parent=1 // pred_fallthru
      _
    // Predicated region
    $region6: #{tpu_custom_call.1} parent=1 // pred_check
      _
    $region7: #{tpu_custom_call.1} parent=1 // pred_check_branch
      %27 = sbr.rel (0) target = $region9
    $region8: #{tpu_custom_call.1} parent=1 // pred_region
      _
    $region9: #{tpu_custom_call.1} parent=1 // pred_fallthru
      _
    // Predicated region
    $region10: #{tpu_custom_call.1} parent=1 // pred_check
      _
    $region11: #{tpu_custom_call.1} parent=1 // pred_check_branch
      %29 = sbr.rel (0) target = $region13
    $region12: #{tpu_custom_call.1} parent=1 // pred_region
      _
    $region13: #{tpu_custom_call.1} parent=1 // pred_fallthru
      _
    // Predicated region
    $region14: #{tpu_custom_call.1} parent=1 // pred_check
      _
    $region15: #{tpu_custom_call.1} parent=1 // pred_check_branch
      %31 = sbr.rel (0) target = $region17
    $region16: #{tpu_custom_call.1} parent=1 // pred_region
      _
    $region17: #{tpu_custom_call.1} parent=1 // pred_fallthru
      _
    // Predicated region
    $region18: #{tpu_custom_call.1} parent=1 // pred_check
      _
    $region19: #{tpu_custom_call.1} parent=1 // pred_check_branch
      %33 = sbr.rel (0) target = $region21
    $region20: #{tpu_custom_call.1} parent=1 // pred_region
      %34 = dma.done [#allocation5], 64
    $region21: #{tpu_custom_call.1} parent=1 // pred_fallthru
      _
    %v35 = vld [vmem:[#allocation4] sm:$0xf]
    %s36 = sld [smem:[#allocation3]]
    %v37 = vstv %s36
    %v38 = vmul.f32 %v37, %v35
    %v39 = vld [vmem:[%s2] sm:$0xf]
    %s40 = sld [smem:[#allocation3 + $0x1]]
    %v41 = vstv %s40
    %v42 = vmul.f32 %v41, %v39
    %v43 = vadd.f32 %v38, %v42
    %v44 = vld [vmem:[%s3] sm:$0xf]
    %s45 = sld [smem:[#allocation3 + $0x2]]
    %v46 = vstv %s45
    %v47 = vmul.f32 %v46, %v44
    %v48 = vadd.f32 %v43, %v47
    %v49 = vld [vmem:[%s4] sm:$0xf]
    %s50 = sld [smem:[#allocation3 + $0x3]]
    %v51 = vstv %s50
    %v52 = vmul.f32 %v51, %v49
    %v53 = vadd.f32 %v48, %v52
    %v54 = vlaneseq
    %vm55 = vcmp.ge.s32.totalorder %v54, 0
    %vm56 = vcmp.lt.s32.totalorder %v54, 512
    %vm57 = vmand %vm55, %vm56
    %58 = vst.msk [vmem:[#allocation7] sm:$0xf] %vm57, %v53
    // Predicated region
    $region22: #{tpu_custom_call.1} parent=1 // pred_check
      _
    $region23: #{tpu_custom_call.1} parent=1 // pred_check_branch
      %60 = sbr.rel (0) target = $region25
    $region24: #{tpu_custom_call.1} parent=1 // pred_region
      %s62 = ssub.s32 64, 64
      %63 = vsyncadd [#allocation6], %s62
      %s65 = sshll.u32 [#allocation7], 4
      %s66 = int_to_ptr.vmem [resolvable:$true] %s65
      %68 = dma.vmem_to_hbm [thread:$0]  %s66, 64, %s5, [#allocation6]
    $region25: #{tpu_custom_call.1} parent=1 // pred_fallthru
      _
    // Predicated region
    $region26: #{tpu_custom_call.1} parent=1 // pred_check
      _
    $region27: #{tpu_custom_call.1} parent=1 // pred_check_branch
      %70 = sbr.rel (0) target = $region29
    $region28: #{tpu_custom_call.1} parent=1 // pred_region
      %71 = dma.done [#allocation6], 64
    $region29: #{tpu_custom_call.1} parent=1 // pred_fallthru
      _
    %72 = vsyncpa [#allocation5], 1
    %73 = vsyncpa [#allocation6], 1

</llo_original>
